<compile_context>
chip_gen: v5e
topology: v5e:2x2
jax: 0.10.0
libtpu: 0.0.40
codegen_flags: <defaults>
</compile_context>

<pallas_src>
import functools
import math

import jax
import jax.numpy as jnp
from jax.experimental import pallas as pl
from jax.experimental.pallas import tpu as pltpu


_VMEM_LIMIT = 64 * 1024 * 1024  # explicit scoped-VMEM budget (re-derive for v7x: 64 MiB physical)


def _round_up(x, m):
    return (x + m - 1) // m * m


def _pick_row_tile(rows, target):
    """Row tile (2nd-minor dim). Prefer a large tile that divides rows (no pad copy)."""
    for t in (target, 512, 256, 128):
        if t <= rows and rows % t == 0 and t % 8 == 0:
            return t, rows, 0
    if rows <= target:                     # small problem: single tile, pad rows to 8
        t = _round_up(rows, 8)
        return t, t, t - rows
    t = target                             # large, awkward rows: pad to the target tile
    rows_p = _round_up(rows, t)
    return t, rows_p, rows_p - rows


def _pick_lane_tile(n, target):
    """Lane-dim tile: multiple of 128 that divides n, else the full dimension."""
    for t in (target, 1024, 512, 256, 128):
        if t <= n and n % t == 0 and t % 128 == 0:
            return t
    return n


def _pick_seq_tile(n, target):
    """Sequence tile (2nd-minor dim of attention blocks): multiple of 8 dividing n, else n."""
    for t in (target, 512, 256, 128, 64, 32, 16, 8):
        if t <= n and n % t == 0 and t % 8 == 0:
            return t
    return n


# ---------------------------------------------------------------------------
# Kernel 1: packed QKV projection  (tile, E) @ (E, tn) + (1, tn)
# ---------------------------------------------------------------------------
def _qkv_proj_kernel(x_ref, w_ref, b_ref, o_ref):
    # Native-dtype operands straight into the MXU, f32 accumulation.
    o = jnp.dot(x_ref[...], w_ref[...], preferred_element_type=jnp.float32)
    o = o + b_ref[...].astype(jnp.float32)
    o_ref[...] = o.astype(o_ref.dtype)


# ---------------------------------------------------------------------------
# Kernel 2: flash-style attention for one (batch, head, q-tile); KV axis innermost.
# ---------------------------------------------------------------------------
def _flash_attn_kernel(q_ref, k_ref, v_ref, o_ref, m_sc, l_sc, acc_sc):
    ki = pl.program_id(3)

    @pl.when(ki == 0)
    def _():
        m_sc[...] = jnp.full(m_sc.shape, -jnp.inf, m_sc.dtype)
        l_sc[...] = jnp.zeros(l_sc.shape, l_sc.dtype)
        acc_sc[...] = jnp.zeros(acc_sc.shape, acc_sc.dtype)

    q = q_ref[...]                                   # (tq, Dh), native dtype
    k = k_ref[...]                                   # (tk, Dh), native dtype
    # scores; 1/sqrt(Dh) already folded into the Q slice of W_in
    s = jax.lax.dot_general(q, k, (((1,), (1,)), ((), ())),
                            preferred_element_type=jnp.float32)      # (tq, tk) f32

    m_prev = m_sc[...]
    m_new = jnp.maximum(m_prev, jnp.max(s, axis=-1, keepdims=True))
    alpha = jnp.exp(m_prev - m_new)
    p = jnp.exp(s - m_new)                                           # f32 stats
    l_sc[...] = alpha * l_sc[...] + jnp.sum(p, axis=-1, keepdims=True)
    acc_sc[...] = alpha * acc_sc[...] + jnp.dot(
        p.astype(v_ref.dtype), v_ref[...], preferred_element_type=jnp.float32)
    m_sc[...] = m_new

    @pl.when(ki == pl.num_programs(3) - 1)
    def _():
        # normalize the (tq, Dh) accumulator, not the (tq, S) probabilities; EUP recip
        o_ref[...] = (acc_sc[...] *
                      pl.reciprocal(l_sc[...], approx=True)).astype(o_ref.dtype)


# ---------------------------------------------------------------------------
# Kernel 3: out-projection + residual + LayerNorm (fused)
# ---------------------------------------------------------------------------
def _outproj_ln_kernel(a_ref, r_ref, w_ref, b_ref, g_ref, bt_ref, o_ref, *, eps):
    h = jnp.dot(a_ref[...], w_ref[...], preferred_element_type=jnp.float32)
    h = h + b_ref[...].astype(jnp.float32)
    h = h + r_ref[...].astype(jnp.float32)           # dropout p=0 -> identity; residual add
    mean = jnp.mean(h, axis=-1, keepdims=True)
    c = h - mean
    var = jnp.mean(c * c, axis=-1, keepdims=True)
    y = c * jax.lax.rsqrt(var + eps)
    y = y * g_ref[...].astype(jnp.float32) + bt_ref[...].astype(jnp.float32)
    o_ref[...] = y.astype(o_ref.dtype)


@functools.partial(jax.jit,
                   static_argnames=("num_heads", "eps", "row_tile", "seq_tile"))
def self_attention_forward(x, w_in, b_in, w_out, b_out, gamma, beta,
                           *, num_heads, eps=1e-5, row_tile=256, seq_tile=256):
    """Pallas forward of the PyTorch SelfAttention module.

    x: (B,S,E); w_in: (3E,E); b_in: (3E,); w_out: (E,E); b_out,gamma,beta: (E,)
    """
    B, S, E = x.shape
    H = num_heads
    Dh = E // H
    assert H * Dh == E, "embed_dim must be divisible by num_heads"

    rows = B * S
    tile, rows_p, pad = _pick_row_tile(rows, row_tile)

    x2d = x.reshape(rows, E)
    x2d_p = jnp.pad(x2d, ((0, pad), (0, 0))) if pad else x2d

    # Fold 1/sqrt(Dh) into the Q rows of the packed in-proj weight/bias (one-time,
    # O(E^2) weight-side op) so no per-score scaling is needed in the attention kernel.
    qscale = jnp.concatenate([
        jnp.full((E,), 1.0 / math.sqrt(Dh), w_in.dtype),
        jnp.ones((2 * E,), w_in.dtype)])
    w_in_t = jnp.transpose(w_in * qscale[:, None])   # (E, 3E): x @ W^T layout
    b_in2 = (b_in * qscale).reshape(1, 3 * E)

    w_out_t = jnp.transpose(w_out)                   # (E, E)
    b_out2 = b_out.reshape(1, E)
    g2 = gamma.reshape(1, E)
    bt2 = beta.reshape(1, E)

    # ---- 1) packed QKV projection, grid (row_tiles, n_tiles) ----------------
    tn = _pick_lane_tile(3 * E, 512)
    qkv = pl.pallas_call(
        _qkv_proj_kernel,
        out_shape=jax.ShapeDtypeStruct((rows_p, 3 * E), x.dtype),
        grid=(rows_p // tile, (3 * E) // tn),
        in_specs=[
            pl.BlockSpec((tile, E), lambda i, j: (i, 0)),
            pl.BlockSpec((E, tn), lambda i, j: (0, j)),     # weight streamed along N
            pl.BlockSpec((1, tn), lambda i, j: (0, j)),
        ],
        out_specs=pl.BlockSpec((tile, tn), lambda i, j: (i, j)),
        compiler_params=pltpu.CompilerParams(
            dimension_semantics=("parallel", "parallel"),
            vmem_limit_bytes=_VMEM_LIMIT),
    )(x2d_p, w_in_t, b_in2)
    qkv = qkv[:rows]

    q, k, v = qkv[:, :E], qkv[:, E:2 * E], qkv[:, 2 * E:]

    def to_heads(t):                                  # (B, H, S, Dh)
        return t.reshape(B, S, H, Dh).transpose(0, 2, 1, 3)

    qh, kh, vh = to_heads(q), to_heads(k), to_heads(v)

    # ---- 2) flash-style attention, grid (B, H, q_tiles, kv_tiles) -----------
    tq = _pick_seq_tile(S, seq_tile)
    tk = _pick_seq_tile(S, seq_tile)
    attn = pl.pallas_call(
        _flash_attn_kernel,
        out_shape=jax.ShapeDtypeStruct((B, H, S, Dh), x.dtype),
        grid=(B, H, S // tq, S // tk),
        in_specs=[
            pl.BlockSpec((None, None, tq, Dh), lambda b, h, qi, ki: (b, h, qi, 0)),
            pl.BlockSpec((None, None, tk, Dh), lambda b, h, qi, ki: (b, h, ki, 0)),
            pl.BlockSpec((None, None, tk, Dh), lambda b, h, qi, ki: (b, h, ki, 0)),
        ],
        out_specs=pl.BlockSpec((None, None, tq, Dh),
                               lambda b, h, qi, ki: (b, h, qi, 0)),
        scratch_shapes=[
            pltpu.VMEM((tq, 1), jnp.float32),     # running max m
            pltpu.VMEM((tq, 1), jnp.float32),     # running denom l
            pltpu.VMEM((tq, Dh), jnp.float32),    # output accumulator
        ],
        compiler_params=pltpu.CompilerParams(
            dimension_semantics=("parallel", "parallel", "parallel", "arbitrary"),
            vmem_limit_bytes=_VMEM_LIMIT),
    )(qh, kh, vh)

    attn2d = attn.transpose(0, 2, 1, 3).reshape(rows, E)
    attn2d_p = jnp.pad(attn2d, ((0, pad), (0, 0))) if pad else attn2d

    # ---- 3) out-proj + residual + LayerNorm fused, grid (row_tiles,) --------
    # TODO(synk): for very large E the resident (E,E) out-proj weight should be
    # N-tiled with a second normalization pass; kept fused here (one HBM trip saved).
    y2d = pl.pallas_call(
        functools.partial(_outproj_ln_kernel, eps=eps),
        out_shape=jax.ShapeDtypeStruct((rows_p, E), x.dtype),
        grid=(rows_p // tile,),
        in_specs=[
            pl.BlockSpec((tile, E), lambda i: (i, 0)),     # attention output
            pl.BlockSpec((tile, E), lambda i: (i, 0)),     # residual (x)
            pl.BlockSpec((E, E), lambda i: (0, 0)),        # W_out^T (resident)
            pl.BlockSpec((1, E), lambda i: (0, 0)),        # b_out
            pl.BlockSpec((1, E), lambda i: (0, 0)),        # gamma
            pl.BlockSpec((1, E), lambda i: (0, 0)),        # beta
        ],
        out_specs=pl.BlockSpec((tile, E), lambda i: (i, 0)),
        compiler_params=pltpu.CompilerParams(
            dimension_semantics=("parallel",),
            vmem_limit_bytes=_VMEM_LIMIT),
    )(attn2d_p, x2d_p, w_out_t, b_out2, g2, bt2)

    return y2d[:rows].reshape(B, S, E)


# ---------------------------------------------------------------------------
# Pure-JAX reference (correctness check of the Pallas path)
# ---------------------------------------------------------------------------
def _reference(x, w_in, b_in, w_out, b_out, gamma, beta, num_heads, eps=1e-5):
    B, S, E = x.shape
    H = num_heads
    Dh = E // H
    qkv = x @ w_in.T + b_in
    q, k, v = jnp.split(qkv, 3, axis=-1)

    def heads(t):
        return t.reshape(B, S, H, Dh).transpose(0, 2, 1, 3)

    q, k, v = heads(q), heads(k), heads(v)
    s = jnp.einsum("bhqd,bhkd->bhqk", q, k) / (Dh ** 0.5)
    p = jax.nn.softmax(s, axis=-1)
    o = jnp.einsum("bhqk,bhkd->bhqd", p, v)
    o = o.transpose(0, 2, 1, 3).reshape(B, S, E)
    o = o @ w_out.T + b_out
    h = o + x
    mean = h.mean(-1, keepdims=True)
    var = ((h - mean) ** 2).mean(-1, keepdims=True)
    return (h - mean) / jnp.sqrt(var + eps) * gamma + beta


if __name__ == "__main__":
    B, S, E, H = 2, 8, 32, 8   # batch=2, seq=8, embed_dim=32, num_heads=8 (module default)

    key = jax.random.PRNGKey(0)
    kx, k1, k2, k3, k4 = jax.random.split(key, 5)

    x = jax.random.normal(kx, (B, S, E), jnp.float32)
    w_in = jax.random.normal(k1, (3 * E, E), jnp.float32) * 0.1   # packed q/k/v in-proj
    b_in = jax.random.normal(k2, (3 * E,), jnp.float32) * 0.1
    w_out = jax.random.normal(k3, (E, E), jnp.float32) * 0.1
    b_out = jax.random.normal(k4, (E,), jnp.float32) * 0.1
    gamma = jnp.ones((E,), jnp.float32)                           # LayerNorm defaults
    beta = jnp.zeros((E,), jnp.float32)

    y = self_attention_forward(x, w_in, b_in, w_out, b_out, gamma, beta,
                               num_heads=H)
    jax.block_until_ready(y)

    y_ref = _reference(x, w_in, b_in, w_out, b_out, gamma, beta, H)
    err = float(jnp.max(jnp.abs(y - y_ref)))
    assert err < 2e-2, f"Pallas vs reference mismatch: max abs err = {err}"
    print("KERNEL_OK")
</pallas_src>

<mosaic_0001>
module attributes {stable_mosaic.version = 11 : i64} {
  func.func @_qkv_proj_kernel(%arg0: i32, %arg1: i32, %arg2: memref<16x32xf32, #tpu.memory_space<vmem>>, %arg3: memref<32x96xf32, #tpu.memory_space<vmem>>, %arg4: memref<1x96xf32, #tpu.memory_space<vmem>>, %arg5: memref<16x96xf32, #tpu.memory_space<vmem>>) attributes {dimension_semantics = [#tpu.dimension_semantics<parallel>, #tpu.dimension_semantics<parallel>], iteration_bounds = array<i64: 1, 1>, scalar_prefetch = 0 : i64, scratch_operands = 0 : i64, tpu.core_type = #tpu.core_type<tc>, window_params = [{transform_indices = @transform_0, window_bounds = array<i64: 16, 32>}, {transform_indices = @transform_1, window_bounds = array<i64: 32, 96>}, {transform_indices = @transform_2, window_bounds = array<i64: 1, 96>}, {transform_indices = @transform_3, window_bounds = array<i64: 16, 96>}]} {
    %c0 = arith.constant 0 : index
    %c0_0 = arith.constant 0 : index
    %0 = vector.load %arg2[%c0, %c0_0] : memref<16x32xf32, #tpu.memory_space<vmem>>, vector<16x32xf32>
    %c0_1 = arith.constant 0 : index
    %c0_2 = arith.constant 0 : index
    %1 = vector.load %arg3[%c0_1, %c0_2] : memref<32x96xf32, #tpu.memory_space<vmem>>, vector<32x96xf32>
    %cst = arith.constant dense<0.000000e+00> : vector<16x96xf32>
    %2 = tpu.matmul %0, %1, %cst {dimension_numbers = #tpu.dot_dimension_numbers<[1], [0], [0], [1], [0, 0, 1, 1], [], []>} : vector<16x32xf32>, vector<32x96xf32>, vector<16x96xf32> -> vector<16x96xf32>
    %c0_3 = arith.constant 0 : index
    %c0_4 = arith.constant 0 : index
    %3 = vector.load %arg4[%c0_3, %c0_4] : memref<1x96xf32, #tpu.memory_space<vmem>>, vector<1x96xf32>
    %4 = vector.broadcast %3 : vector<1x96xf32> to vector<16x96xf32>
    %5 = arith.addf %2, %4 : vector<16x96xf32>
    %c0_5 = arith.constant 0 : index
    %c0_6 = arith.constant 0 : index
    %6 = vector.load %arg5[%c0_5, %c0_6] : memref<16x96xf32, #tpu.memory_space<vmem>>, vector<16x96xf32>
    tpu.vector_store %arg5[%c0_5, %c0_6], %5 {strides = array<i32>} : memref<16x96xf32, #tpu.memory_space<vmem>>, vector<16x96xf32>,
    return
  }
  func.func @transform_0(%arg0: i32, %arg1: i32) -> (i32, i32) {
    %c0_i32 = arith.constant 0 : i32
    %c0_i32_0 = arith.constant 0 : i32
    return %arg0, %c0_i32 : i32, i32
  }
  func.func @transform_1(%arg0: i32, %arg1: i32) -> (i32, i32) {
    %c0_i32 = arith.constant 0 : i32
    %c0_i32_0 = arith.constant 0 : i32
    return %c0_i32, %arg1 : i32, i32
  }
  func.func @transform_2(%arg0: i32, %arg1: i32) -> (i32, i32) {
    %c0_i32 = arith.constant 0 : i32
    %c0_i32_0 = arith.constant 0 : i32
    return %c0_i32, %arg1 : i32, i32
  }
  func.func @transform_3(%arg0: i32, %arg1: i32) -> (i32, i32) {
    %c0_i32 = arith.constant 0 : i32
    return %arg0, %arg1 : i32, i32
  }
}

module attributes {stable_mosaic.version = 11 : i64} {
  func.func @_flash_attn_kernel(%arg0: i32, %arg1: i32, %arg2: i32, %arg3: i32, %arg4: memref<1x1x8x4xf32, #tpu.memory_space<vmem>>, %arg5: memref<1x1x8x4xf32, #tpu.memory_space<vmem>>, %arg6: memref<1x1x8x4xf32, #tpu.memory_space<vmem>>, %arg7: memref<1x1x8x4xf32, #tpu.memory_space<vmem>>, %arg8: memref<8x1xf32, #tpu.memory_space<vmem>>, %arg9: memref<8x1xf32, #tpu.memory_space<vmem>>, %arg10: memref<8x4xf32, #tpu.memory_space<vmem>>) attributes {dimension_semantics = [#tpu.dimension_semantics<parallel>, #tpu.dimension_semantics<parallel>, #tpu.dimension_semantics<parallel>, #tpu.dimension_semantics<arbitrary>], iteration_bounds = array<i64: 2, 8, 1, 1>, scalar_prefetch = 0 : i64, scratch_operands = 3 : i64, tpu.core_type = #tpu.core_type<tc>, window_params = [{transform_indices = @transform_0, window_bounds = array<i64: 1, 1, 8, 4>}, {transform_indices = @transform_1, window_bounds = array<i64: 1, 1, 8, 4>}, {transform_indices = @transform_2, window_bounds = array<i64: 1, 1, 8, 4>}, {transform_indices = @transform_3, window_bounds = array<i64: 1, 1, 8, 4>}]} {
    %c0_i32 = arith.constant 0 : i32
    %0 = arith.cmpi eq, %arg3, %c0_i32 : i32
    %1 = arith.extui %0 : i1 to i32
    %c0_i32_0 = arith.constant 0 : i32
    %2 = arith.cmpi ne, %1, %c0_i32_0 : i32
    scf.if %2 {
      %cst_29 = arith.constant 0xFF800000 : f32
      %35 = vector.broadcast %cst_29 : f32 to vector<8x1xf32>
      %c0_30 = arith.constant 0 : index
      %c0_31 = arith.constant 0 : index
      %36 = vector.load %arg8[%c0_30, %c0_31] : memref<8x1xf32, #tpu.memory_space<vmem>>, vector<8x1xf32>
      tpu.vector_store %arg8[%c0_30, %c0_31], %35 {strides = array<i32>} : memref<8x1xf32, #tpu.memory_space<vmem>>, vector<8x1xf32>,
      %cst_32 = arith.constant 0.000000e+00 : f32
      %37 = vector.broadcast %cst_32 : f32 to vector<8x1xf32>
      %c0_33 = arith.constant 0 : index
      %c0_34 = arith.constant 0 : index
      %38 = vector.load %arg9[%c0_33, %c0_34] : memref<8x1xf32, #tpu.memory_space<vmem>>, vector<8x1xf32>
      tpu.vector_store %arg9[%c0_33, %c0_34], %37 {strides = array<i32>} : memref<8x1xf32, #tpu.memory_space<vmem>>, vector<8x1xf32>,
      %cst_35 = arith.constant 0.000000e+00 : f32
      %39 = vector.broadcast %cst_35 : f32 to vector<8x4xf32>
      %c0_36 = arith.constant 0 : index
      %c0_37 = arith.constant 0 : index
      %40 = vector.load %arg10[%c0_36, %c0_37] : memref<8x4xf32, #tpu.memory_space<vmem>>, vector<8x4xf32>
      tpu.vector_store %arg10[%c0_36, %c0_37], %39 {strides = array<i32>} : memref<8x4xf32, #tpu.memory_space<vmem>>, vector<8x4xf32>,
    } else {
    }
    %c0 = arith.constant 0 : index
    %c0_1 = arith.constant 0 : index
    %c0_2 = arith.constant 0 : index
    %c0_3 = arith.constant 0 : index
    %3 = vector.load %arg4[%c0, %c0_1, %c0_2, %c0_3] : memref<1x1x8x4xf32, #tpu.memory_space<vmem>>, vector<1x1x8x4xf32>
    %4 = vector.shape_cast %3 : vector<1x1x8x4xf32> to vector<8x4xf32>
    %c0_4 = arith.constant 0 : index
    %c0_5 = arith.constant 0 : index
    %c0_6 = arith.constant 0 : index
    %c0_7 = arith.constant 0 : index
    %5 = vector.load %arg5[%c0_4, %c0_5, %c0_6, %c0_7] : memref<1x1x8x4xf32, #tpu.memory_space<vmem>>, vector<1x1x8x4xf32>
    %6 = vector.shape_cast %5 : vector<1x1x8x4xf32> to vector<8x4xf32>
    %cst = arith.constant dense<0.000000e+00> : vector<8x8xf32>
    %7 = tpu.matmul %4, %6, %cst {dimension_numbers = #tpu.dot_dimension_numbers<[1], [1], [0], [0], [0, 0, 1, 0], [], []>} : vector<8x4xf32>, vector<8x4xf32>, vector<8x8xf32> -> vector<8x8xf32>
    %c0_8 = arith.constant 0 : index
    %c0_9 = arith.constant 0 : index
    %8 = vector.load %arg8[%c0_8, %c0_9] : memref<8x1xf32, #tpu.memory_space<vmem>>, vector<8x1xf32>
    %cst_10 = arith.constant dense<0xFF800000> : vector<8xf32>
    %9 = vector.multi_reduction <maximumf>, %7, %cst_10 [1] : vector<8x8xf32> to vector<8xf32>
    %10 = vector.shape_cast %9 : vector<8xf32> to vector<8x1xf32>
    %11 = arith.maximumf %8, %10 : vector<8x1xf32>
    %12 = arith.subf %8, %11 : vector<8x1xf32>
    %13 = math.exp %12 : vector<8x1xf32>
    %14 = vector.broadcast %11 : vector<8x1xf32> to vector<8x8xf32>
    %15 = arith.subf %7, %14 : vector<8x8xf32>
    %16 = math.exp %15 : vector<8x8xf32>
    %c0_11 = arith.constant 0 : index
    %c0_12 = arith.constant 0 : index
    %17 = vector.load %arg9[%c0_11, %c0_12] : memref<8x1xf32, #tpu.memory_space<vmem>>, vector<8x1xf32>
    %18 = arith.mulf %13, %17 : vector<8x1xf32>
    %cst_13 = arith.constant dense<0.000000e+00> : vector<8xf32>
    %19 = vector.multi_reduction <add>, %16, %cst_13 [1] : vector<8x8xf32> to vector<8xf32>
    %20 = vector.shape_cast %19 : vector<8xf32> to vector<8x1xf32>
    %21 = arith.addf %18, %20 : vector<8x1xf32>
    %c0_14 = arith.constant 0 : index
    %c0_15 = arith.constant 0 : index
    %22 = vector.load %arg9[%c0_14, %c0_15] : memref<8x1xf32, #tpu.memory_space<vmem>>, vector<8x1xf32>
    tpu.vector_store %arg9[%c0_14, %c0_15], %21 {strides = array<i32>} : memref<8x1xf32, #tpu.memory_space<vmem>>, vector<8x1xf32>,
    %c0_16 = arith.constant 0 : index
    %c0_17 = arith.constant 0 : index
    %23 = vector.load %arg10[%c0_16, %c0_17] : memref<8x4xf32, #tpu.memory_space<vmem>>, vector<8x4xf32>
    %24 = vector.broadcast %13 : vector<8x1xf32> to vector<8x4xf32>
    %25 = arith.mulf %24, %23 : vector<8x4xf32>
    %c0_18 = arith.constant 0 : index
    %c0_19 = arith.constant 0 : index
    %c0_20 = arith.constant 0 : index
    %c0_21 = arith.constant 0 : index
    %26 = vector.load %arg6[%c0_18, %c0_19, %c0_20, %c0_21] : memref<1x1x8x4xf32, #tpu.memory_space<vmem>>, vector<1x1x8x4xf32>
    %27 = vector.shape_cast %26 : vector<1x1x8x4xf32> to vector<8x4xf32>
    %cst_22 = arith.constant dense<0.000000e+00> : vector<8x4xf32>
    %28 = tpu.matmul %16, %27, %cst_22 {dimension_numbers = #tpu.dot_dimension_numbers<[1], [0], [0], [1], [0, 0, 1, 1], [], []>} : vector<8x8xf32>, vector<8x4xf32>, vector<8x4xf32> -> vector<8x4xf32>
    %29 = arith.addf %25, %28 : vector<8x4xf32>
    %c0_23 = arith.constant 0 : index
    %c0_24 = arith.constant 0 : index
    %30 = vector.load %arg10[%c0_23, %c0_24] : memref<8x4xf32, #tpu.memory_space<vmem>>, vector<8x4xf32>
    tpu.vector_store %arg10[%c0_23, %c0_24], %29 {strides = array<i32>} : memref<8x4xf32, #tpu.memory_space<vmem>>, vector<8x4xf32>,
    %c0_25 = arith.constant 0 : index
    %c0_26 = arith.constant 0 : index
    %31 = vector.load %arg8[%c0_25, %c0_26] : memref<8x1xf32, #tpu.memory_space<vmem>>, vector<8x1xf32>
    tpu.vector_store %arg8[%c0_25, %c0_26], %11 {strides = array<i32>} : memref<8x1xf32, #tpu.memory_space<vmem>>, vector<8x1xf32>,
    %c0_i32_27 = arith.constant 0 : i32
    %32 = arith.cmpi eq, %arg3, %c0_i32_27 : i32
    %33 = arith.extui %32 : i1 to i32
    %c0_i32_28 = arith.constant 0 : i32
    %34 = arith.cmpi ne, %33, %c0_i32_28 : i32
    scf.if %34 {
      %c0_29 = arith.constant 0 : index
      %c0_30 = arith.constant 0 : index
      %35 = vector.load %arg10[%c0_29, %c0_30] : memref<8x4xf32, #tpu.memory_space<vmem>>, vector<8x4xf32>
      %c0_31 = arith.constant 0 : index
      %c0_32 = arith.constant 0 : index
      %36 = vector.load %arg9[%c0_31, %c0_32] : memref<8x1xf32, #tpu.memory_space<vmem>>, vector<8x1xf32>
      %37 = tpu.reciprocal %36 {approx = true} : vector<8x1xf32> -> vector<8x1xf32>
      %38 = vector.broadcast %37 : vector<8x1xf32> to vector<8x4xf32>
      %39 = arith.mulf %35, %38 : vector<8x4xf32>
      %c0_33 = arith.constant 0 : index
      %c0_34 = arith.constant 0 : index
      %c0_35 = arith.constant 0 : index
      %c0_36 = arith.constant 0 : index
      %40 = vector.load %arg7[%c0_33, %c0_34, %c0_35, %c0_36] : memref<1x1x8x4xf32, #tpu.memory_space<vmem>>, vector<1x1x8x4xf32>
      %41 = vector.shape_cast %40 : vector<1x1x8x4xf32> to vector<8x4xf32>
      %42 = vector.shape_cast %39 : vector<8x4xf32> to vector<1x1x8x4xf32>
      tpu.vector_store %arg7[%c0_33, %c0_34, %c0_35, %c0_36], %42 {strides = array<i32>} : memref<1x1x8x4xf32, #tpu.memory_space<vmem>>, vector<1x1x8x4xf32>,
    } else {
    }
    return
  }
  func.func @transform_0(%arg0: i32, %arg1: i32, %arg2: i32, %arg3: i32) -> (i32, i32, i32, i32) {
    %c0_i32 = arith.constant 0 : i32
    %c0_i32_0 = arith.constant 0 : i32
    return %arg0, %arg1, %arg2, %c0_i32 : i32, i32, i32, i32
  }
  func.func @transform_1(%arg0: i32, %arg1: i32, %arg2: i32, %arg3: i32) -> (i32, i32, i32, i32) {
    %c0_i32 = arith.constant 0 : i32
    %c0_i32_0 = arith.constant 0 : i32
    return %arg0, %arg1, %arg3, %c0_i32 : i32, i32, i32, i32
  }
  func.func @transform_2(%arg0: i32, %arg1: i32, %arg2: i32, %arg3: i32) -> (i32, i32, i32, i32) {
    %c0_i32 = arith.constant 0 : i32
    %c0_i32_0 = arith.constant 0 : i32
    return %arg0, %arg1, %arg3, %c0_i32 : i32, i32, i32, i32
  }
  func.func @transform_3(%arg0: i32, %arg1: i32, %arg2: i32, %arg3: i32) -> (i32, i32, i32, i32) {
    %c0_i32 = arith.constant 0 : i32
    %c0_i32_0 = arith.constant 0 : i32
    return %arg0, %arg1, %arg2, %c0_i32 : i32, i32, i32, i32
  }
}

module attributes {stable_mosaic.version = 11 : i64} {
  func.func @_outproj_ln_kernel(%arg0: i32, %arg1: memref<16x32xf32, #tpu.memory_space<vmem>>, %arg2: memref<16x32xf32, #tpu.memory_space<vmem>>, %arg3: memref<32x32xf32, #tpu.memory_space<vmem>>, %arg4: memref<1x32xf32, #tpu.memory_space<vmem>>, %arg5: memref<1x32xf32, #tpu.memory_space<vmem>>, %arg6: memref<1x32xf32, #tpu.memory_space<vmem>>, %arg7: memref<16x32xf32, #tpu.memory_space<vmem>>) attributes {dimension_semantics = [#tpu.dimension_semantics<parallel>], iteration_bounds = array<i64: 1>, scalar_prefetch = 0 : i64, scratch_operands = 0 : i64, tpu.core_type = #tpu.core_type<tc>, window_params = [{transform_indices = @transform_0, window_bounds = array<i64: 16, 32>}, {transform_indices = @transform_1, window_bounds = array<i64: 16, 32>}, {pipeline_mode = #tpu.pipeline_mode<synchronous>, transform_indices = @transform_2, window_bounds = array<i64: 32, 32>}, {pipeline_mode = #tpu.pipeline_mode<synchronous>, transform_indices = @transform_3, window_bounds = array<i64: 1, 32>}, {pipeline_mode = #tpu.pipeline_mode<synchronous>, transform_indices = @transform_4, window_bounds = array<i64: 1, 32>}, {pipeline_mode = #tpu.pipeline_mode<synchronous>, transform_indices = @transform_5, window_bounds = array<i64: 1, 32>}, {transform_indices = @transform_6, window_bounds = array<i64: 16, 32>}]} {
    %c0 = arith.constant 0 : index
    %c0_0 = arith.constant 0 : index
    %0 = vector.load %arg1[%c0, %c0_0] : memref<16x32xf32, #tpu.memory_space<vmem>>, vector<16x32xf32>
    %c0_1 = arith.constant 0 : index
    %c0_2 = arith.constant 0 : index
    %1 = vector.load %arg3[%c0_1, %c0_2] : memref<32x32xf32, #tpu.memory_space<vmem>>, vector<32x32xf32>
    %cst = arith.constant dense<0.000000e+00> : vector<16x32xf32>
    %2 = tpu.matmul %0, %1, %cst {dimension_numbers = #tpu.dot_dimension_numbers<[1], [0], [0], [1], [0, 0, 1, 1], [], []>} : vector<16x32xf32>, vector<32x32xf32>, vector<16x32xf32> -> vector<16x32xf32>
    %c0_3 = arith.constant 0 : index
    %c0_4 = arith.constant 0 : index
    %3 = vector.load %arg4[%c0_3, %c0_4] : memref<1x32xf32, #tpu.memory_space<vmem>>, vector<1x32xf32>
    %4 = vector.broadcast %3 : vector<1x32xf32> to vector<16x32xf32>
    %5 = arith.addf %2, %4 : vector<16x32xf32>
    %c0_5 = arith.constant 0 : index
    %c0_6 = arith.constant 0 : index
    %6 = vector.load %arg2[%c0_5, %c0_6] : memref<16x32xf32, #tpu.memory_space<vmem>>, vector<16x32xf32>
    %7 = arith.addf %5, %6 : vector<16x32xf32>
    %cst_7 = arith.constant dense<0.000000e+00> : vector<16xf32>
    %8 = vector.multi_reduction <add>, %7, %cst_7 [1] : vector<16x32xf32> to vector<16xf32>
    %9 = vector.shape_cast %8 : vector<16xf32> to vector<16x1xf32>
    %cst_8 = arith.constant 3.200000e+01 : f32
    %10 = vector.broadcast %cst_8 : f32 to vector<16x1xf32>
    %11 = arith.divf %9, %10 : vector<16x1xf32>
    %12 = vector.broadcast %11 : vector<16x1xf32> to vector<16x32xf32>
    %13 = arith.subf %7, %12 : vector<16x32xf32>
    %14 = arith.mulf %13, %13 : vector<16x32xf32>
    %cst_9 = arith.constant dense<0.000000e+00> : vector<16xf32>
    %15 = vector.multi_reduction <add>, %14, %cst_9 [1] : vector<16x32xf32> to vector<16xf32>
    %16 = vector.shape_cast %15 : vector<16xf32> to vector<16x1xf32>
    %cst_10 = arith.constant 3.200000e+01 : f32
    %17 = vector.broadcast %cst_10 : f32 to vector<16x1xf32>
    %18 = arith.divf %16, %17 : vector<16x1xf32>
    %cst_11 = arith.constant 9.99999974E-6 : f32
    %19 = vector.broadcast %cst_11 : f32 to vector<16x1xf32>
    %20 = arith.addf %18, %19 : vector<16x1xf32>
    %21 = math.rsqrt %20 : vector<16x1xf32>
    %22 = vector.broadcast %21 : vector<16x1xf32> to vector<16x32xf32>
    %23 = arith.mulf %13, %22 : vector<16x32xf32>
    %c0_12 = arith.constant 0 : index
    %c0_13 = arith.constant 0 : index
    %24 = vector.load %arg5[%c0_12, %c0_13] : memref<1x32xf32, #tpu.memory_space<vmem>>, vector<1x32xf32>
    %25 = vector.broadcast %24 : vector<1x32xf32> to vector<16x32xf32>
    %26 = arith.mulf %23, %25 : vector<16x32xf32>
    %c0_14 = arith.constant 0 : index
    %c0_15 = arith.constant 0 : index
    %27 = vector.load %arg6[%c0_14, %c0_15] : memref<1x32xf32, #tpu.memory_space<vmem>>, vector<1x32xf32>
    %28 = vector.broadcast %27 : vector<1x32xf32> to vector<16x32xf32>
    %29 = arith.addf %26, %28 : vector<16x32xf32>
    %c0_16 = arith.constant 0 : index
    %c0_17 = arith.constant 0 : index
    %30 = vector.load %arg7[%c0_16, %c0_17] : memref<16x32xf32, #tpu.memory_space<vmem>>, vector<16x32xf32>
    tpu.vector_store %arg7[%c0_16, %c0_17], %29 {strides = array<i32>} : memref<16x32xf32, #tpu.memory_space<vmem>>, vector<16x32xf32>,
    return
  }
  func.func @transform_0(%arg0: i32) -> (i32, i32) {
    %c0_i32 = arith.constant 0 : i32
    %c0_i32_0 = arith.constant 0 : i32
    return %arg0, %c0_i32 : i32, i32
  }
  func.func @transform_1(%arg0: i32) -> (i32, i32) {
    %c0_i32 = arith.constant 0 : i32
    %c0_i32_0 = arith.constant 0 : i32
    return %arg0, %c0_i32 : i32, i32
  }
  func.func @transform_2(%arg0: i32) -> (i32, i32) {
    %c0_i32 = arith.constant 0 : i32
    %c0_i32_0 = arith.constant 0 : i32
    %c0_i32_1 = arith.constant 0 : i32
    return %c0_i32, %c0_i32_0 : i32, i32
  }
  func.func @transform_3(%arg0: i32) -> (i32, i32) {
    %c0_i32 = arith.constant 0 : i32
    %c0_i32_0 = arith.constant 0 : i32
    %c0_i32_1 = arith.constant 0 : i32
    return %c0_i32, %c0_i32_0 : i32, i32
  }
  func.func @transform_4(%arg0: i32) -> (i32, i32) {
    %c0_i32 = arith.constant 0 : i32
    %c0_i32_0 = arith.constant 0 : i32
    %c0_i32_1 = arith.constant 0 : i32
    return %c0_i32, %c0_i32_0 : i32, i32
  }
  func.func @transform_5(%arg0: i32) -> (i32, i32) {
    %c0_i32 = arith.constant 0 : i32
    %c0_i32_0 = arith.constant 0 : i32
    %c0_i32_1 = arith.constant 0 : i32
    return %c0_i32, %c0_i32_0 : i32, i32
  }
  func.func @transform_6(%arg0: i32) -> (i32, i32) {
    %c0_i32 = arith.constant 0 : i32
    %c0_i32_0 = arith.constant 0 : i32
    return %arg0, %c0_i32 : i32, i32
  }
}

</mosaic_0001>

<llo_original>
// kernel: self_attention_forward.3
$region0: #{self_attention_forward.3}
  #allocation0 [shape = 'u32[]', space=smem, size = 0x4, offset = 0x4, fixed_abs, tag = 'smem constant byte address 0x4 - core index']
  #allocation1 [shape = 'u32[72,128]{1,0:T(1,128)}', space=vmem, size = 0x9000, scoped, tag = 'internal scratch']
  %s0 = inlined_call_operand.vmem [shape: f32[16,32], index: 0, kind: input, shape index: {}]
  %s1 = inlined_call_operand.vmem [shape: f32[32,96], index: 1, kind: input, shape index: {}]
  %s2 = inlined_call_operand.vmem [shape: f32[1,96], index: 2, kind: input, shape index: {}]
  %s3 = inlined_call_operand.vmem [shape: f32[16,96], index: 3, kind: output, shape index: {}]
  %s4 = sld [smem:[#allocation0]]
  $region22: #{self_attention_forward.3} parent=0
    _
  %s6 = ssub.s32 1, %s4
  %s7 = scalar_select 0, %s6, %s4
  // Predicated region
  $region2: #{self_attention_forward.3} parent=0 // pred_check
    _
  $region3: #{self_attention_forward.3} parent=0 // pred_check_branch
    %9 = sbr.rel (0) target = $region5
  $region4: #{self_attention_forward.3} parent=0 // pred_region
    _
  $region5: #{self_attention_forward.3} parent=0 // pred_fallthru
    _
  // Predicated region
  $region6: #{self_attention_forward.3} parent=0 // pred_check
    _
  $region7: #{self_attention_forward.3} parent=0 // pred_check_branch
    %11 = sbr.rel (0) target = $region9
  $region8: #{self_attention_forward.3} parent=0 // pred_region
    _
  $region9: #{self_attention_forward.3} parent=0 // pred_fallthru
    _
  // Predicated region
  $region10: #{self_attention_forward.3} parent=0 // pred_check
    _
  $region11: #{self_attention_forward.3} parent=0 // pred_check_branch
    %13 = sbr.rel (0) target = $region13
  $region12: #{self_attention_forward.3} parent=0 // pred_region
    _
  $region13: #{self_attention_forward.3} parent=0 // pred_fallthru
    _
  %v14 = vld [vmem:[%s0] sm:$0xff]
  %v15 = vld [vmem:[%s0 + $0x8] sm:$0xff]
  %v16 = vld [vmem:[%s1] sm:$0xff]
  %v17 = vld [vmem:[%s1 + $0x8] sm:$0xff]
  %v18 = vld [vmem:[%s1 + $0x10] sm:$0xff]
  %v19 = vld [vmem:[%s1 + $0x18] sm:$0xff]
  %v20 = vld [vmem:[%s2] sm:$0x1]
  %v22 = vperm.slane %v20, 0
  %vm24 = vcmask 261120
  %v26 = vsel %vm24, %v14, 0
  %v29 = vsel %vm24, %v15, 0
  %31 = vmatpush.msra.mxu0 0.0
  %32 = vmatpush.msra.mxu0 0.0
  %33 = vmatpush.msra.mxu0 0.0
  %34 = vmatpush.msra.mxu0 0.0
  %35 = vmatpush.msra.mxu0 0.0
  %36 = vmatpush.msra.mxu0 0.0
  %37 = vmatpush.msra.mxu0 0.0
  %38 = vmatpush.msra.mxu0 0.0
  %39 = vmatpush.msra.mxu0 0.0
  %40 = vmatpush.msra.mxu0 0.0
  %41 = vmatpush.msra.mxu0 0.0
  %42 = vmatpush.msra.mxu0 0.0
  %43 = vmatpush.msra.mxu0 %v19
  %44 = vmatpush.msra.mxu0 %v18
  %45 = vmatpush.msra.mxu0 %v17
  %46 = vmatpush.msra.mxu0 %v16
  %47 = vmatmul.f32.gmra.mxu0 %v26
  %v48 = vpop.f32.mrf.mxu0
  %v49 = vadd.f32 %v22, %v48
  %50 = vmatmul.f32.gmra.mxu0 %v29
  %v51 = vpop.f32.mrf.mxu0
  %v52 = vadd.f32 %v22, %v51
  %53 = vdwg.mxu0
  %vm54 = vcmask 785408
  %55 = vst.msk [vmem:[%s3] sm:$0xff] %vm54, %v49
  %56 = vst.msk [vmem:[%s3 + $0x8] sm:$0xff] %vm54, %v52
  // Predicated region
  $region14: #{self_attention_forward.3} parent=0 // pred_check
    _
  $region15: #{self_attention_forward.3} parent=0 // pred_check_branch
    %58 = sbr.rel (0) target = $region17
  $region16: #{self_attention_forward.3} parent=0 // pred_region
    _
  $region17: #{self_attention_forward.3} parent=0 // pred_fallthru
    _
  // Predicated region
  $region18: #{self_attention_forward.3} parent=0 // pred_check
    _
  $region19: #{self_attention_forward.3} parent=0 // pred_check_branch
    %60 = sbr.rel (0) target = $region21
  $region20: #{self_attention_forward.3} parent=0 // pred_region
    _
  $region21: #{self_attention_forward.3} parent=0 // pred_fallthru
    _

// kernel: self_attention_forward.5
$region0: #{self_attention_forward.5}
  #allocation0 [shape = 'u32[]', space=smem, size = 0x4, offset = 0x4, fixed_abs, tag = 'smem constant byte address 0x4 - core index']
  #allocation1 [shape = 'u32[72,128]{1,0:T(1,128)}', space=vmem, size = 0x9000, scoped, tag = 'internal scratch']
  %s0 = inlined_call_operand.vmem [shape: f32[16,32], index: 0, kind: input, shape index: {}]
  %s1 = inlined_call_operand.vmem [shape: f32[16,32], index: 1, kind: input, shape index: {}]
  %s2 = inlined_call_operand.vmem [shape: f32[32,32], index: 2, kind: input, shape index: {}]
  %s3 = inlined_call_operand.vmem [shape: f32[1,32], index: 3, kind: input, shape index: {}]
  %s4 = inlined_call_operand.vmem [shape: f32[1,32], index: 4, kind: input, shape index: {}]
  %s5 = inlined_call_operand.vmem [shape: f32[1,32], index: 5, kind: input, shape index: {}]
  %s6 = inlined_call_operand.hbm [shape: f32[16,32], index: 6, kind: output, shape index: {}]
  %s7 = sld [smem:[#allocation0]]
  $region34: #{self_attention_forward.5} parent=0
    _
  %s9 = ssub.s32 1, %s7
  %s10 = scalar_select 0, %s9, %s7
  $region1: #{self_attention_forward.5} parent=0
    #allocation2 [shape = 'u8[8192]{0}', space=vmem, size = 0x2000, scoped, tag = 'output window, operand 0, single buffered']
    #allocation3 [shape = 's32[1]{0}', space=sflag, size = 0x4, scoped, tag = 'scoped memory for self_attention_forward.5']
    %11 = vsyncpa [#allocation3], 0
    // Predicated region
    $region2: #{self_attention_forward.5} parent=1 // pred_check
      _
    $region3: #{self_attention_forward.5} parent=1 // pred_check_branch
      %13 = sbr.rel (0) target = $region5
    $region4: #{self_attention_forward.5} parent=1 // pred_region
      _
    $region5: #{self_attention_forward.5} parent=1 // pred_fallthru
      _
    // Predicated region
    $region6: #{self_attention_forward.5} parent=1 // pred_check
      _
    $region7: #{self_attention_forward.5} parent=1 // pred_check_branch
      %15 = sbr.rel (0) target = $region9
    $region8: #{self_attention_forward.5} parent=1 // pred_region
      _
    $region9: #{self_attention_forward.5} parent=1 // pred_fallthru
      _
    // Predicated region
    $region10: #{self_attention_forward.5} parent=1 // pred_check
      _
    $region11: #{self_attention_forward.5} parent=1 // pred_check_branch
      %17 = sbr.rel (0) target = $region13
    $region12: #{self_attention_forward.5} parent=1 // pred_region
      _
    $region13: #{self_attention_forward.5} parent=1 // pred_fallthru
      _
    // Predicated region
    $region14: #{self_attention_forward.5} parent=1 // pred_check
      _
    $region15: #{self_attention_forward.5} parent=1 // pred_check_branch
      %19 = sbr.rel (0) target = $region17
    $region16: #{self_attention_forward.5} parent=1 // pred_region
      _
    $region17: #{self_attention_forward.5} parent=1 // pred_fallthru
      _
    // Predicated region
    $region18: #{self_attention_forward.5} parent=1 // pred_check
      _
    $region19: #{self_attention_forward.5} parent=1 // pred_check_branch
      %21 = sbr.rel (0) target = $region21
    $region20: #{self_attention_forward.5} parent=1 // pred_region
      _
    $region21: #{self_attention_forward.5} parent=1 // pred_fallthru
      _
    // Predicated region
    $region22: #{self_attention_forward.5} parent=1 // pred_check
      _
    $region23: #{self_attention_forward.5} parent=1 // pred_check_branch
      %23 = sbr.rel (0) target = $region25
    $region24: #{self_attention_forward.5} parent=1 // pred_region
      _
    $region25: #{self_attention_forward.5} parent=1 // pred_fallthru
      _
    %v24 = vld [vmem:[%s0] sm:$0xff]
    %v25 = vld [vmem:[%s0 + $0x8] sm:$0xff]
    %v26 = vld [vmem:[%s2] sm:$0xff]
    %v27 = vld [vmem:[%s2 + $0x8] sm:$0xff]
    %v28 = vld [vmem:[%s2 + $0x10] sm:$0xff]
    %v29 = vld [vmem:[%s2 + $0x18] sm:$0xff]
    %v30 = vld [vmem:[%s3] sm:$0x1]
    %v32 = vperm.slane %v30, 0
    %vm34 = vcmask 261120
    %v36 = vsel %vm34, %v24, 0
    %v39 = vsel %vm34, %v25, 0
    %41 = vmatpush.msra.mxu0 0.0
    %42 = vmatpush.msra.mxu0 0.0
    %43 = vmatpush.msra.mxu0 0.0
    %44 = vmatpush.msra.mxu0 0.0
    %45 = vmatpush.msra.mxu0 0.0
    %46 = vmatpush.msra.mxu0 0.0
    %47 = vmatpush.msra.mxu0 0.0
    %48 = vmatpush.msra.mxu0 0.0
    %49 = vmatpush.msra.mxu0 0.0
    %50 = vmatpush.msra.mxu0 0.0
    %51 = vmatpush.msra.mxu0 0.0
    %52 = vmatpush.msra.mxu0 0.0
    %53 = vmatpush.msra.mxu0 %v29
    %54 = vmatpush.msra.mxu0 %v28
    %55 = vmatpush.msra.mxu0 %v27
    %56 = vmatpush.msra.mxu0 %v26
    %57 = vmatmul.f32.gmra.mxu0 %v36
    %v58 = vpop.f32.mrf.mxu0
    %v59 = vadd.f32 %v32, %v58
    %60 = vmatmul.f32.gmra.mxu0 %v39
    %v61 = vpop.f32.mrf.mxu0
    %v62 = vadd.f32 %v32, %v61
    %63 = vdwg.mxu0
    %v64 = vld [vmem:[%s1] sm:$0xff]
    %v65 = vld [vmem:[%s1 + $0x8] sm:$0xff]
    %v66 = vadd.f32 %v59, %v64
    %v67 = vadd.f32 %v62, %v65
    %v68 = vsel %vm34, %v66, 0.0
    %69 = vadd.xlane.f32.xlu0 %v68
    %v70 = vpop.xlane.xlu0 %69
    %v71 = vsel %vm34, %v67, 0.0
    %72 = vadd.xlane.f32.xlu0 %v71
    %v73 = vpop.xlane.xlu0 %72
    %v74 = vrcp.pop 32.0
    %v75 = vmul.f32 32.0, %v74
    %v76 = vsub.f32 1.0, %v75
    %v77 = vmul.f32 %v74, %v76
    %v78 = vadd.f32 %v74, %v77
    %vm79 = vweird.f32 %v74
    %v80 = vsel %vm79, %v74, %v78
    %v81 = vmul.f32 %v70, %v80
    %v82 = vmul.f32 %v73, %v80
    %v83 = vsub.f32 %v66, %v81
    %v84 = vsub.f32 %v67, %v82
    %v85 = vmul.f32 %v83, %v83
    %v86 = vmul.f32 %v84, %v84
    %v87 = vsel %vm34, %v85, 0.0
    %88 = vadd.xlane.f32.xlu0 %v87
    %v89 = vpop.xlane.xlu0 %88
    %v90 = vsel %vm34, %v86, 0.0
    %91 = vadd.xlane.f32.xlu0 %v90
    %v92 = vpop.xlane.xlu0 %91
    %v93 = vmul.f32 %v89, %v80
    %v94 = vmul.f32 %v92, %v80
    %v95 = vadd.f32 %v93, 1e-05
    %v96 = vadd.f32 %v94, 1e-05
    %v97 = vrsqrt.pop %v95
    %v98 = vmul.f32 %v97, %v95
    %v99 = vmul.f32 %v98, %v97
    %v100 = vmul.f32 0.5, %v99
    %v101 = vsub.f32 1.5, %v100
    %v102 = vmul.f32 %v97, %v101
    %vm103 = vweird.f32 %v95
    %vm104 = vweird.f32 %v97
    %vm105 = vmor %vm103, %vm104
    %v106 = vsel %vm105, %v97, %v102
    %v107 = vrsqrt.pop %v96
    %v108 = vmul.f32 %v107, %v96
    %v109 = vmul.f32 %v108, %v107
    %v110 = vmul.f32 0.5, %v109
    %v111 = vsub.f32 1.5, %v110
    %v112 = vmul.f32 %v107, %v111
    %vm113 = vweird.f32 %v96
    %vm114 = vweird.f32 %v107
    %vm115 = vmor %vm113, %vm114
    %v116 = vsel %vm115, %v107, %v112
    %v117 = vmul.f32 %v83, %v106
    %v118 = vmul.f32 %v84, %v116
    %v119 = vld [vmem:[%s4] sm:$0x1]
    %v121 = vperm.slane %v119, 0
    %v123 = vmul.f32 %v117, %v121
    %v124 = vmul.f32 %v118, %v121
    %v125 = vld [vmem:[%s5] sm:$0x1]
    %v127 = vperm.slane %v125, 0
    %v129 = vadd.f32 %v123, %v127
    %v130 = vadd.f32 %v124, %v127
    %131 = vst.msk [vmem:[#allocation2] sm:$0xff] %vm34, %v129
    %132 = vst.msk [vmem:[#allocation2 + $0x8] sm:$0xff] %vm34, %v130
    // Predicated region
    $region26: #{self_attention_forward.5} parent=1 // pred_check
      _
    $region27: #{self_attention_forward.5} parent=1 // pred_check_branch
      %134 = sbr.rel (0) target = $region29
    $region28: #{self_attention_forward.5} parent=1 // pred_region
      %136 = vsyncadd [#allocation3], 0
      %s137 = sshll.u32 [#allocation2], 4
      %s138 = int_to_ptr.vmem [resolvable:$true] %s137
      %s139 = sshll.u32 %s6, 4
      %s140 = int_to_ptr.hbm [resolvable:$true] %s139
      %145 = dma.vmem_to_hbm [thread:$0]  %s138, 256, %s140, [#allocation3], 128, 128, 8
    $region29: #{self_attention_forward.5} parent=1 // pred_fallthru
      _
    // Predicated region
    $region30: #{self_attention_forward.5} parent=1 // pred_check
      _
    $region31: #{self_attention_forward.5} parent=1 // pred_check_branch
      %147 = sbr.rel (0) target = $region33
    $region32: #{self_attention_forward.5} parent=1 // pred_region
      %149 = dma.done [#allocation3], 256
    $region33: #{self_attention_forward.5} parent=1 // pred_fallthru
      _
    %150 = vsyncpa [#allocation3], 1

// kernel: self_attention_forward.4
$region0: #{self_attention_forward.4}
  #allocation0 [shape = 'u32[]', space=smem, size = 0x4, offset = 0x4, fixed_abs, tag = 'smem constant byte address 0x4 - core index']
  #allocation1 [shape = 'u32[72,128]{1,0:T(1,128)}', space=vmem, size = 0x9000, scoped, tag = 'internal scratch']
  #allocation2 [shape = 'f32[8,1]{1,0:T(8,128)}', space=vmem, size = 0x1000, scoped, tag = 'scratch operand']
  #allocation3 [shape = 'f32[8,1]{1,0:T(8,128)}', space=vmem, size = 0x1000, scoped, tag = 'scratch operand']
  #allocation4 [shape = 'f32[8,4]{1,0:T(8,128)}', space=vmem, size = 0x1000, scoped, tag = 'scratch operand']
  %s0 = inlined_call_operand.vmem [shape: f32[2,8,8,4], index: 0, kind: input, shape index: {}]
  %s1 = inlined_call_operand.vmem [shape: f32[2,8,8,4], index: 1, kind: input, shape index: {}]
  %s2 = inlined_call_operand.vmem [shape: f32[2,8,8,4], index: 2, kind: input, shape index: {}]
  %s3 = inlined_call_operand.vmem [shape: f32[2,8,8,4], index: 3, kind: output, shape index: {}]
  %s4 = sld [smem:[#allocation0]]
  $region53: #{self_attention_forward.4} parent=0
    _
  %s6 = ssub.s32 1, %s4
  %s7 = scalar_select 0, %s6, %s4
  loop: start=0, step=1, limit=18
  $region2: #{self_attention_forward.4} parent=0 // loop_pre_header
    _
  $region3: #{self_attention_forward.4} parent=0 // loop_header
    %s9 = sphi 0, %s13
    %p10 = scmp.ge.s32.totalorder %s9, 18
    %s16 = sphi 0, %s42
    %s17 = sphi 0, %s38
    %s18 = sphi 0, %s34
    %s19 = sphi 0, %s30
    %s20 = sphi 0, %s16
    %s21 = sphi 0, %s17
    %s22 = sphi 0, %s18
    %s23 = sphi 0, %s19
    %s24 = sphi 0, %s20
    %s25 = sphi 0, %s21
    %s26 = sphi 0, %s22
    %s27 = sphi 0, %s23
    %s49 = sphi 0, %s51
    %s52 = sphi 0, %s49
    %s53 = sphi 0, %s52
    %s69 = sphi 0, %s53
    %s79 = sphi 0, %s81
    %s82 = sphi 0, %s79
    %s83 = sphi 0, %s82
    %s99 = sphi 0, %s83
    %s109 = sphi 0, %s111
    %s112 = sphi 0, %s109
    %s113 = sphi 0, %s112
    %s129 = sphi 0, %s113
    %s139 = sphi 0, %s141
    %s142 = sphi 0, %s139
    %s143 = sphi 0, %s142
    %s159 = sphi 0, %s143
  $region4: #{self_attention_forward.4} parent=0 // loop_header_branch
    %12 = sbr.rel (%p10) target = $region8
  $region5: #{self_attention_forward.4} parent=0 // loop_body
    %s14 = ssub.s32 %s9, 1
    %s15 = ssub.s32 %s9, 2
    %s28 = sadd.s32 1, %s19
    %p29 = scmp.ge.s32.totalorder %s28, 1
    %s30 = scalar_select %p29, 0, %s28
    %s31 = sadd.s32 1, %s18
    %s32 = scalar_select %p29, %s31, %s18
    %p33 = scmp.ge.s32.totalorder %s32, 1
    %s34 = scalar_select %p33, 0, %s32
    %s35 = sadd.s32 1, %s17
    %s36 = scalar_select %p33, %s35, %s17
    %p37 = scmp.ge.s32.totalorder %s36, 8
    %s38 = scalar_select %p37, 0, %s36
    %s39 = sadd.s32 1, %s16
    %s40 = scalar_select %p37, %s39, %s16
    %p41 = scmp.ge.s32.totalorder %s40, 2
    %s42 = scalar_select %p41, 0, %s40
    %s43 = ssub.s32 %s16, %s42
    %s44 = ssub.s32 %s17, %s38
    %s45 = sor.u32 %s43, %s44
    %s46 = ssub.s32 %s18, %s34
    %s47 = sor.u32 %s45, %s46
    %p48 = scmp.eq.s32.totalorder %s47, 0
    %s50 = sadd.s32 %s49, 1
    %s51 = scalar_select %p48, %s49, %s50
    %p54 = pneg %p48
    %p55 = scmp.eq.s32.totalorder %s9, 15
    %p56 = por %p54, %p55
    %p57 = scmp.ne.s32.totalorder %s49, %s52
    %p58 = scmp.eq.s32.totalorder %s9, 0
    %p59 = por %p57, %p58
    %p60 = scmp.ne.s32.totalorder %s49, %s52
    %p61 = scmp.eq.s32.totalorder %s14, 15
    %p62 = por %p60, %p61
    %p63 = scmp.ne.s32.totalorder %s52, %s53
    %p64 = scmp.eq.s32.totalorder %s14, 0
    %p65 = por %p63, %p64
    %p66 = scmp.ne.s32.totalorder %s52, %s53
    %p67 = scmp.eq.s32.totalorder %s15, 15
    %p68 = por %p66, %p67
    %p70 = scmp.ne.s32.totalorder %s53, %s69
    %p71 = scmp.eq.s32.totalorder %s15, 0
    %p72 = por %p70, %p71
    %s73 = ssub.s32 %s16, %s42
    %s74 = ssub.s32 %s17, %s38
    %s75 = sor.u32 %s73, %s74
    %s76 = ssub.s32 %s19, %s30
    %s77 = sor.u32 %s75, %s76
    %p78 = scmp.eq.s32.totalorder %s77, 0
    %s80 = sadd.s32 %s79, 1
    %s81 = scalar_select %p78, %s79, %s80
    %p84 = pneg %p78
    %p85 = scmp.eq.s32.totalorder %s9, 15
    %p86 = por %p84, %p85
    %p87 = scmp.ne.s32.totalorder %s79, %s82
    %p88 = scmp.eq.s32.totalorder %s9, 0
    %p89 = por %p87, %p88
    %p90 = scmp.ne.s32.totalorder %s79, %s82
    %p91 = scmp.eq.s32.totalorder %s14, 15
    %p92 = por %p90, %p91
    %p93 = scmp.ne.s32.totalorder %s82, %s83
    %p94 = scmp.eq.s32.totalorder %s14, 0
    %p95 = por %p93, %p94
    %p96 = scmp.ne.s32.totalorder %s82, %s83
    %p97 = scmp.eq.s32.totalorder %s15, 15
    %p98 = por %p96, %p97
    %p100 = scmp.ne.s32.totalorder %s83, %s99
    %p101 = scmp.eq.s32.totalorder %s15, 0
    %p102 = por %p100, %p101
    %s103 = ssub.s32 %s16, %s42
    %s104 = ssub.s32 %s17, %s38
    %s105 = sor.u32 %s103, %s104
    %s106 = ssub.s32 %s19, %s30
    %s107 = sor.u32 %s105, %s106
    %p108 = scmp.eq.s32.totalorder %s107, 0
    %s110 = sadd.s32 %s109, 1
    %s111 = scalar_select %p108, %s109, %s110
    %p114 = pneg %p108
    %p115 = scmp.eq.s32.totalorder %s9, 15
    %p116 = por %p114, %p115
    %p117 = scmp.ne.s32.totalorder %s109, %s112
    %p118 = scmp.eq.s32.totalorder %s9, 0
    %p119 = por %p117, %p118
    %p120 = scmp.ne.s32.totalorder %s109, %s112
    %p121 = scmp.eq.s32.totalorder %s14, 15
    %p122 = por %p120, %p121
    %p123 = scmp.ne.s32.totalorder %s112, %s113
    %p124 = scmp.eq.s32.totalorder %s14, 0
    %p125 = por %p123, %p124
    %p126 = scmp.ne.s32.totalorder %s112, %s113
    %p127 = scmp.eq.s32.totalorder %s15, 15
    %p128 = por %p126, %p127
    %p130 = scmp.ne.s32.totalorder %s113, %s129
    %p131 = scmp.eq.s32.totalorder %s15, 0
    %p132 = por %p130, %p131
    %s133 = ssub.s32 %s16, %s42
    %s134 = ssub.s32 %s17, %s38
    %s135 = sor.u32 %s133, %s134
    %s136 = ssub.s32 %s18, %s34
    %s137 = sor.u32 %s135, %s136
    %p138 = scmp.eq.s32.totalorder %s137, 0
    %s140 = sadd.s32 %s139, 1
    %s141 = scalar_select %p138, %s139, %s140
    %p144 = pneg %p138
    %p145 = scmp.eq.s32.totalorder %s9, 15
    %p146 = por %p144, %p145
    %p147 = scmp.ne.s32.totalorder %s139, %s142
    %p148 = scmp.eq.s32.totalorder %s9, 0
    %p149 = por %p147, %p148
    %p150 = scmp.ne.s32.totalorder %s139, %s142
    %p151 = scmp.eq.s32.totalorder %s14, 15
    %p152 = por %p150, %p151
    %p153 = scmp.ne.s32.totalorder %s142, %s143
    %p154 = scmp.eq.s32.totalorder %s14, 0
    %p155 = por %p153, %p154
    %p156 = scmp.ne.s32.totalorder %s142, %s143
    %p157 = scmp.eq.s32.totalorder %s15, 15
    %p158 = por %p156, %p157
    %p160 = scmp.ne.s32.totalorder %s143, %s159
    %p161 = scmp.eq.s32.totalorder %s15, 0
    %p162 = por %p160, %p161
    %p163 = scmp.le.s32.totalorder 1, %s9
    %p164 = scmp.lt.s32.totalorder %s9, 17
    %p165 = pnand %p163, %p164
    %p166 = pneg %p165
    // Predicated region
    $region9: #{self_attention_forward.4} parent=5 // pred_check
      _
    $region10: #{self_attention_forward.4} parent=5 // pred_check_branch
      %168 = sbr.rel (%p165) target = $region12
    $region11: #{self_attention_forward.4} parent=5 // pred_region
      %s169 = ssub.s32 %s9, 1
    $region12: #{self_attention_forward.4} parent=5 // pred_fallthru
      _
    %p170 = scmp.lt.s32.totalorder %s9, 16
    // Predicated region
    $region13: #{self_attention_forward.4} parent=5 // pred_check
      %p171 = pneg %p170
    $region14: #{self_attention_forward.4} parent=5 // pred_check_branch
      %173 = sbr.rel (%p171) target = $region16
    $region15: #{self_attention_forward.4} parent=5 // pred_region
      // Predicated region
      $region17: #{self_attention_forward.4} parent=15 // pred_check
        %p174 = pneg %p59
      $region18: #{self_attention_forward.4} parent=15 // pred_check_branch
        %176 = sbr.rel (%p174) target = $region20
      $region19: #{self_attention_forward.4} parent=15 // pred_region
        %p177 = scmp.lt.s32.totalorder %s16, 1
        %s178 = scalar_select %p177, %s16, 1
        %p179 = scmp.lt.s32.totalorder %s17, 7
        %s180 = scalar_select %p179, %s17, 7
        %p181 = scmp.lt.s32.totalorder %s18, 0
        %s182 = scalar_select %p181, %s18, 0
        %s183 = sadd.s32 %s182, %s180
        %s184 = smul.addr %s178, 8
        %s185 = sadd.s32 %s183, %s184
        %s186 = smul.addr %s185, 8
        %s187 = scalar_lea.vmem %s0, %s186
      $region20: #{self_attention_forward.4} parent=15 // pred_fallthru
        _
      // Predicated region
      $region21: #{self_attention_forward.4} parent=15 // pred_check
        %p188 = pneg %p89
      $region22: #{self_attention_forward.4} parent=15 // pred_check_branch
        %190 = sbr.rel (%p188) target = $region24
      $region23: #{self_attention_forward.4} parent=15 // pred_region
        %p191 = scmp.lt.s32.totalorder %s16, 1
        %s192 = scalar_select %p191, %s16, 1
        %p193 = scmp.lt.s32.totalorder %s17, 7
        %s194 = scalar_select %p193, %s17, 7
        %p195 = scmp.lt.s32.totalorder %s19, 0
        %s196 = scalar_select %p195, %s19, 0
        %s197 = sadd.s32 %s196, %s194
        %s198 = smul.addr %s192, 8
        %s199 = sadd.s32 %s197, %s198
        %s200 = smul.addr %s199, 8
        %s201 = scalar_lea.vmem %s1, %s200
      $region24: #{self_attention_forward.4} parent=15 // pred_fallthru
        _
      // Predicated region
      $region25: #{self_attention_forward.4} parent=15 // pred_check
        %p202 = pneg %p119
      $region26: #{self_attention_forward.4} parent=15 // pred_check_branch
        %204 = sbr.rel (%p202) target = $region28
      $region27: #{self_attention_forward.4} parent=15 // pred_region
        %p205 = scmp.lt.s32.totalorder %s16, 1
        %s206 = scalar_select %p205, %s16, 1
        %p207 = scmp.lt.s32.totalorder %s17, 7
        %s208 = scalar_select %p207, %s17, 7
        %p209 = scmp.lt.s32.totalorder %s19, 0
        %s210 = scalar_select %p209, %s19, 0
        %s211 = sadd.s32 %s210, %s208
        %s212 = smul.addr %s206, 8
        %s213 = sadd.s32 %s211, %s212
        %s214 = smul.addr %s213, 8
        %s215 = scalar_lea.vmem %s2, %s214
      $region28: #{self_attention_forward.4} parent=15 // pred_fallthru
        _
    $region16: #{self_attention_forward.4} parent=5 // pred_fallthru
      _
    %p216 = scmp.le.s32.totalorder 1, %s9
    %p217 = scmp.lt.s32.totalorder %s9, 17
    %p218 = pnand %p216, %p217
    %p219 = pneg %p218
    // Predicated region
    $region29: #{self_attention_forward.4} parent=5 // pred_check
      _
    $region30: #{self_attention_forward.4} parent=5 // pred_check_branch
      %221 = sbr.rel (%p218) target = $region32
    $region31: #{self_attention_forward.4} parent=5 // pred_region
      %s222 = ssub.s32 %s9, 1
      %p223 = scmp.lt.s32.totalorder %s20, 1
      %s224 = scalar_select %p223, %s20, 1
      %p225 = scmp.lt.s32.totalorder %s21, 7
      %s226 = scalar_select %p225, %s21, 7
      %p227 = scmp.lt.s32.totalorder %s22, 0
      %s228 = scalar_select %p227, %s22, 0
      %s229 = sadd.s32 %s228, %s226
      %s230 = smul.addr %s224, 8
      %s231 = sadd.s32 %s229, %s230
      %s232 = smul.addr %s231, 8
      %s233 = scalar_lea.vmem %s0, %s232
      %p234 = pneg %p65
      %p235 = pneg %p62
      %p236 = scmp.lt.s32.totalorder %s20, 1
      %s237 = scalar_select %p236, %s20, 1
      %p238 = scmp.lt.s32.totalorder %s21, 7
      %s239 = scalar_select %p238, %s21, 7
      %p240 = scmp.lt.s32.totalorder %s23, 0
      %s241 = scalar_select %p240, %s23, 0
      %s242 = sadd.s32 %s241, %s239
      %s243 = smul.addr %s237, 8
      %s244 = sadd.s32 %s242, %s243
      %s245 = smul.addr %s244, 8
      %s246 = scalar_lea.vmem %s1, %s245
      %p247 = pneg %p95
      %p248 = pneg %p92
      %p249 = scmp.lt.s32.totalorder %s20, 1
      %s250 = scalar_select %p249, %s20, 1
      %p251 = scmp.lt.s32.totalorder %s21, 7
      %s252 = scalar_select %p251, %s21, 7
      %p253 = scmp.lt.s32.totalorder %s23, 0
      %s254 = scalar_select %p253, %s23, 0
      %s255 = sadd.s32 %s254, %s252
      %s256 = smul.addr %s250, 8
      %s257 = sadd.s32 %s255, %s256
      %s258 = smul.addr %s257, 8
      %s259 = scalar_lea.vmem %s2, %s258
      %p260 = pneg %p125
      %p261 = pneg %p122
      %p262 = pneg %p155
      %p263 = pneg %p152
      %p264 = scmp.lt.s32.totalorder %s20, 1
      %s265 = scalar_select %p264, %s20, 1
      %p266 = scmp.lt.s32.totalorder %s21, 7
      %s267 = scalar_select %p266, %s21, 7
      %p268 = scmp.lt.s32.totalorder %s22, 0
      %s269 = scalar_select %p268, %s22, 0
      %s270 = sadd.s32 %s269, %s267
      %s271 = smul.addr %s265, 8
      %s272 = sadd.s32 %s270, %s271
      %s273 = smul.addr %s272, 8
      %s274 = scalar_lea.vmem %s3, %s273
      %p275 = scmp.lt.s32.totalorder %s20, 1
      %s276 = scalar_select %p275, %s20, 1
      %p277 = scmp.lt.s32.totalorder %s21, 7
      %s278 = scalar_select %p277, %s21, 7
      %p279 = scmp.lt.s32.totalorder %s22, 0
      %s280 = scalar_select %p279, %s22, 0
      %s281 = sadd.s32 %s280, %s278
      %s282 = smul.addr %s276, 8
      %s283 = sadd.s32 %s281, %s282
      %s284 = smul.addr %s283, 8
      %s285 = scalar_lea.vmem %s0, %s284
      %p286 = scmp.lt.s32.totalorder %s20, 1
      %s287 = scalar_select %p286, %s20, 1
      %p288 = scmp.lt.s32.totalorder %s21, 7
      %s289 = scalar_select %p288, %s21, 7
      %p290 = scmp.lt.s32.totalorder %s23, 0
      %s291 = scalar_select %p290, %s23, 0
      %s292 = sadd.s32 %s291, %s289
      %s293 = smul.addr %s287, 8
      %s294 = sadd.s32 %s292, %s293
      %s295 = smul.addr %s294, 8
      %s296 = scalar_lea.vmem %s1, %s295
      %p297 = scmp.lt.s32.totalorder %s20, 1
      %s298 = scalar_select %p297, %s20, 1
      %p299 = scmp.lt.s32.totalorder %s21, 7
      %s300 = scalar_select %p299, %s21, 7
      %p301 = scmp.lt.s32.totalorder %s23, 0
      %s302 = scalar_select %p301, %s23, 0
      %s303 = sadd.s32 %s302, %s300
      %s304 = smul.addr %s298, 8
      %s305 = sadd.s32 %s303, %s304
      %s306 = smul.addr %s305, 8
      %s307 = scalar_lea.vmem %s2, %s306
      %p308 = scmp.lt.s32.totalorder %s20, 1
      %s309 = scalar_select %p308, %s20, 1
      %p310 = scmp.lt.s32.totalorder %s21, 7
      %s311 = scalar_select %p310, %s21, 7
      %p312 = scmp.lt.s32.totalorder %s22, 0
      %s313 = scalar_select %p312, %s22, 0
      %s314 = sadd.s32 %s313, %s311
      %s315 = smul.addr %s309, 8
      %s316 = sadd.s32 %s314, %s315
      %s317 = smul.addr %s316, 8
      %s318 = scalar_lea.vmem %s3, %s317
      %p319 = scmp.eq.s32.totalorder %s23, 0
      // Predicated region
      $region33: #{self_attention_forward.4} parent=31 // pred_check
        %p320 = pneg %p319
      $region34: #{self_attention_forward.4} parent=31 // pred_check_branch
        %322 = sbr.rel (%p320) target = $region36
      $region35: #{self_attention_forward.4} parent=31 // pred_region
        %vm323 = vcmask 7168
        %324 = vst.msk [vmem:[#allocation2] sm:$0xff] %vm323, -inf
        %325 = vst.msk [vmem:[#allocation3] sm:$0xff] %vm323, 0.0
        %vm326 = vcmask 31744
        %327 = vst.msk [vmem:[#allocation4] sm:$0xff] %vm326, 0.0
      $region36: #{self_attention_forward.4} parent=31 // pred_fallthru
        _
      %v328 = vld [vmem:[%s285] sm:$0xff]
      %v329 = vld [vmem:[%s296] sm:$0xff]
      %vm330 = vcmask 31744
      %v332 = vsel %vm330, %v328, 0
      %v335 = vsel %vm330, %v329, 0
      %337 = vmatpush.xpose.msra.mxu0 0.0
      %338 = vmatpush.xpose.msra.mxu0 0.0
      %339 = vmatpush.xpose.msra.mxu0 0.0
      %340 = vmatpush.xpose.msra.mxu0 0.0
      %341 = vmatpush.xpose.msra.mxu0 0.0
      %342 = vmatpush.xpose.msra.mxu0 0.0
      %343 = vmatpush.xpose.msra.mxu0 0.0
      %344 = vmatpush.xpose.msra.mxu0 0.0
      %345 = vmatpush.xpose.msra.mxu0 0.0
      %346 = vmatpush.xpose.msra.mxu0 0.0
      %347 = vmatpush.xpose.msra.mxu0 0.0
      %348 = vmatpush.xpose.msra.mxu0 0.0
      %349 = vmatpush.xpose.msra.mxu0 0.0
      %350 = vmatpush.xpose.msra.mxu0 0.0
      %351 = vmatpush.xpose.msra.mxu0 0.0
      %352 = vmatpush.xpose.msra.mxu0 %v335
      %353 = vmatmul.f32.gmra.mxu0 %v332
      %v354 = vpop.f32.mrf.mxu0
      %v355 = vadd.f32 0.0, %v354
      %356 = vdwg.mxu0
      %v357 = vld [vmem:[#allocation2] sm:$0xff]
      %vm358 = vcmask 64512
      %v359 = vsel %vm358, %v355, -inf
      %360 = vmax.xlane.f32.xlu0 %v359
      %v361 = vpop.xlane.xlu0 %360
      %v362 = vmax.f32 %v357, %v361
      %v363 = vsub.f32 %v357, %v362
      %v364 = vmul.f32 %v363, 1.442695
      %v365 = vpow.pop %v364
      %367 = vset.pattern.permute.xlu0 0
      %368 = vperm.xlu0 %367, %v362
      %v369 = vpop.permute.xlu0 %368
      %v371 = vsub.f32 %v355, %v369
      %v372 = vmul.f32 %v371, 1.442695
      %v373 = vpow.pop %v372
      %v374 = vld [vmem:[#allocation3] sm:$0xff]
      %v375 = vmul.f32 %v365, %v374
      %v376 = vsel %vm358, %v373, 0.0
      %377 = vadd.xlane.f32.xlu0 %v376
      %v378 = vpop.xlane.xlu0 %377
      %v379 = vadd.f32 %v375, %v378
      %vm380 = vcmask 7168
      %381 = vst.msk [vmem:[#allocation3] sm:$0xff] %vm380, %v379
      %v382 = vld [vmem:[#allocation4] sm:$0xff]
      %384 = vset.pattern.permute.xlu0 0
      %385 = vperm.xlu0 %384, %v365
      %v386 = vpop.permute.xlu0 %385
      %v388 = vmul.f32 %v386, %v382
      %v389 = vld [vmem:[%s307] sm:$0xff]
      %v391 = vsel %vm358, %v373, 0
      %393 = vmatpush.msra.mxu0 0.0
      %394 = vmatpush.msra.mxu0 0.0
      %395 = vmatpush.msra.mxu0 0.0
      %396 = vmatpush.msra.mxu0 0.0
      %397 = vmatpush.msra.mxu0 0.0
      %398 = vmatpush.msra.mxu0 0.0
      %399 = vmatpush.msra.mxu0 0.0
      %400 = vmatpush.msra.mxu0 0.0
      %401 = vmatpush.msra.mxu0 0.0
      %402 = vmatpush.msra.mxu0 0.0
      %403 = vmatpush.msra.mxu0 0.0
      %404 = vmatpush.msra.mxu0 0.0
      %405 = vmatpush.msra.mxu0 0.0
      %406 = vmatpush.msra.mxu0 0.0
      %407 = vmatpush.msra.mxu0 0.0
      %408 = vmatpush.msra.mxu0 %v389
      %409 = vmatmul.f32.gmra.mxu0 %v391
      %v410 = vpop.f32.mrf.mxu0
      %v411 = vadd.f32 0.0, %v410
      %412 = vdwg.mxu0
      %v413 = vadd.f32 %v388, %v411
      %414 = vst.msk [vmem:[#allocation4] sm:$0xff] %vm330, %v413
      %415 = vst.msk [vmem:[#allocation2] sm:$0xff] %vm380, %v362
      // Predicated region
      $region37: #{self_attention_forward.4} parent=31 // pred_check
        %p416 = pneg %p319
      $region38: #{self_attention_forward.4} parent=31 // pred_check_branch
        %418 = sbr.rel (%p416) target = $region40
      $region39: #{self_attention_forward.4} parent=31 // pred_region
        %v419 = vld [vmem:[#allocation4] sm:$0xff]
        %v420 = vld [vmem:[#allocation3] sm:$0xff]
        %v421 = vrcp.pop %v420
        %423 = vset.pattern.permute.xlu0 0
        %424 = vperm.xlu0 %423, %v421
        %v425 = vpop.permute.xlu0 %424
        %v427 = vmul.f32 %v419, %v425
        %428 = vst.msk [vmem:[%s318] sm:$0xff] %vm330, %v427
      $region40: #{self_attention_forward.4} parent=31 // pred_fallthru
        _
      %p429 = scmp.lt.s32.totalorder %s20, 1
      %s430 = scalar_select %p429, %s20, 1
      %p431 = scmp.lt.s32.totalorder %s21, 7
      %s432 = scalar_select %p431, %s21, 7
      %p433 = scmp.lt.s32.totalorder %s22, 0
      %s434 = scalar_select %p433, %s22, 0
      %s435 = sadd.s32 %s434, %s432
      %s436 = smul.addr %s430, 8
      %s437 = sadd.s32 %s435, %s436
      %s438 = smul.addr %s437, 8
      %s439 = scalar_lea.vmem %s3, %s438
      // Predicated region
      $region41: #{self_attention_forward.4} parent=31 // pred_check
        %p440 = pneg %p152
      $region42: #{self_attention_forward.4} parent=31 // pred_check_branch
        %442 = sbr.rel (%p440) target = $region44
      $region43: #{self_attention_forward.4} parent=31 // pred_region
        _
      $region44: #{self_attention_forward.4} parent=31 // pred_fallthru
        _
    $region32: #{self_attention_forward.4} parent=5 // pred_fallthru
      _
    %p443 = scmp.le.s32.totalorder 2, %s9
    // Predicated region
    $region45: #{self_attention_forward.4} parent=5 // pred_check
      %p444 = pneg %p443
    $region46: #{self_attention_forward.4} parent=5 // pred_check_branch
      %446 = sbr.rel (%p444) target = $region48
    $region47: #{self_attention_forward.4} parent=5 // pred_region
      %s447 = ssub.s32 %s9, 2
      // Predicated region
      $region49: #{self_attention_forward.4} parent=47 // pred_check
        %p448 = pneg %p158
      $region50: #{self_attention_forward.4} parent=47 // pred_check_branch
        %450 = sbr.rel (%p448) target = $region52
      $region51: #{self_attention_forward.4} parent=47 // pred_region
        %p451 = scmp.lt.s32.totalorder %s24, 1
        %s452 = scalar_select %p451, %s24, 1
        %p453 = scmp.lt.s32.totalorder %s25, 7
        %s454 = scalar_select %p453, %s25, 7
        %p455 = scmp.lt.s32.totalorder %s26, 0
        %s456 = scalar_select %p455, %s26, 0
        %s457 = sadd.s32 %s456, %s454
        %s458 = smul.addr %s452, 8
        %s459 = sadd.s32 %s457, %s458
        %s460 = smul.addr %s459, 8
        %s461 = scalar_lea.vmem %s3, %s460
      $region52: #{self_attention_forward.4} parent=47 // pred_fallthru
        _
    $region48: #{self_attention_forward.4} parent=5 // pred_fallthru
      _
  $region6: #{self_attention_forward.4} parent=0 // loop_footer
    %s13 = sadd.s32 1, %s9
  $region7: #{self_attention_forward.4} parent=0 // loop_footer_branch
    %8 = sbr.rel target = $region3
  $region8: #{self_attention_forward.4} parent=0 // loop_exit
    _

</llo_original>
